<compile_context>
chip_gen: v7x
topology: tpu7x:2x2x1
jax: 0.10.0
libtpu: 0.0.40
codegen_flags: <defaults>
</compile_context>

<pallas_src>
import functools

import jax
import jax.numpy as jnp
from jax.experimental import pallas as pl
from jax.experimental.pallas import tpu as pltpu

OUT_LANES = 128  # lane-dense packed output width (requires 2*nA + 1 <= 128)


def ppo_net_kernel(x_ref, w1_ref, w2_ref, wh_ref, b_ref, out_ref, *,
                   nA, h1_dim, h2_dim):
    x = x_ref[...]  # (B, nS) — one stacked call per grid step

    # Static, lane-aligned slices of the packed bias row (zero-cost views).
    b1 = b_ref[:, :h1_dim]
    b2 = b_ref[:, h1_dim:h1_dim + h2_dim]
    bh = b_ref[:, h1_dim + h2_dim:]

    # input layer + ReLU
    h1 = jnp.dot(x, w1_ref[...], preferred_element_type=jnp.float32) + b1
    h1 = jnp.maximum(h1, 0.0)

    # hidden layer + ReLU
    h2 = jnp.dot(h1, w2_ref[...], preferred_element_type=jnp.float32) + b2
    h2 = jnp.maximum(h2, 0.0)

    # fused actor+critic head: one MXU push (critic N=1 folded in).
    # lanes: [0:nA]=logits, [nA:2nA]=logits copy, [2nA]=v, rest=0
    heads = jnp.dot(h2, wh_ref[...], preferred_element_type=jnp.float32) + bh

    # softmax over dim=0 (batch axis within this call) — matches
    # torch F.softmax(action, dim=0)
    m = jnp.max(heads, axis=0, keepdims=True)
    e = jnp.exp(heads - m)
    s = jnp.sum(e, axis=0, keepdims=True)
    sm = e / s  # exact divide: single (1,128) vreg, keeps a_prob exact

    # log of the raw logits (faithful to torch.log(action); NaN for negatives).
    lg = jnp.log(heads)

    # pack: lanes [0:nA] <- a_prob, [nA:2nA] <- log_prob, [2nA] <- v, rest <- heads(=0 pad)
    lane = jax.lax.broadcasted_iota(jnp.int32, heads.shape, dimension=1)
    packed = jnp.where(lane < nA, sm, jnp.where(lane < 2 * nA, lg, heads))

    out_ref[...] = packed  # single lane-dense (B, 128) unmasked store


def make_params(key, nS, nA, hidden_dims=(256, 128)):
    """Deterministic init mirroring torch.nn.Linear default (U[-1/sqrt(fan_in), +])."""
    dims = [nS, hidden_dims[0], hidden_dims[1]]
    keys = jax.random.split(key, 8)

    def lin(kw, kb, fan_in, fan_out):
        bound = 1.0 / jnp.sqrt(jnp.float32(fan_in))
        w = jax.random.uniform(kw, (fan_in, fan_out), jnp.float32, -bound, bound)
        b = jax.random.uniform(kb, (1, fan_out), jnp.float32, -bound, bound)
        return w, b

    w1, b1 = lin(keys[0], keys[1], dims[0], dims[1])
    w2, b2 = lin(keys[2], keys[3], dims[1], dims[2])
    wa, ba = lin(keys[4], keys[5], dims[2], nA)
    wc, bc = lin(keys[6], keys[7], dims[2], 1)
    return dict(w1=w1, b1=b1, w2=w2, b2=b2, wa=wa, ba=ba, wc=wc, bc=bc)


def pack_params(params, nA):
    """One-time host-side re-layout: fuse actor+critic head weights/biases and
    concatenate all biases into a single lane-dense row."""
    assert 2 * nA + 1 <= OUT_LANES, "packed-output layout requires 2*nA+1 <= 128"
    h2_dim = params["w2"].shape[1]

    wh = jnp.zeros((h2_dim, OUT_LANES), jnp.float32)
    wh = wh.at[:, :nA].set(params["wa"])
    wh = wh.at[:, nA:2 * nA].set(params["wa"])
    wh = wh.at[:, 2 * nA:2 * nA + 1].set(params["wc"])

    bh = jnp.zeros((1, OUT_LANES), jnp.float32)
    bh = bh.at[:, :nA].set(params["ba"])
    bh = bh.at[:, nA:2 * nA].set(params["ba"])
    bh = bh.at[:, 2 * nA:2 * nA + 1].set(params["bc"])

    b_all = jnp.concatenate([params["b1"], params["b2"], bh], axis=1)
    return dict(w1=params["w1"], w2=params["w2"], wh=wh, b_all=b_all, nA=nA)


@functools.partial(jax.jit, static_argnames=("nA",))
def _ppo_forward_stacked(states, w1, w2, wh, b_all, *, nA):
    """states: (N, B, nS) — N independent forward calls stacked on a leading axis."""
    N, B, nS = states.shape
    h1_dim = w1.shape[1]
    h2_dim = w2.shape[1]

    flops = 2 * N * B * (nS * h1_dim + h1_dim * h2_dim + h2_dim * OUT_LANES)
    transcendentals = 2 * N * B * OUT_LANES  # exp + log per packed lane row
    bytes_accessed = 4 * (states.size + w1.size + w2.size + wh.size
                          + b_all.size + N * B * OUT_LANES)

    out = pl.pallas_call(
        functools.partial(ppo_net_kernel, nA=nA, h1_dim=h1_dim, h2_dim=h2_dim),
        out_shape=jax.ShapeDtypeStruct((N, B, OUT_LANES), jnp.float32),
        grid=(N,),
        in_specs=[
            # per-call state block; leading stacked axis squeezed away
            pl.BlockSpec((None, B, nS), lambda i: (i, 0, 0)),
            # weights: constant block index -> DMA'd once, VMEM-resident across grid
            pl.BlockSpec(w1.shape, lambda i: (0, 0)),
            pl.BlockSpec(w2.shape, lambda i: (0, 0)),
            pl.BlockSpec(wh.shape, lambda i: (0, 0)),
            pl.BlockSpec(b_all.shape, lambda i: (0, 0)),
        ],
        out_specs=pl.BlockSpec((None, B, OUT_LANES), lambda i: (i, 0, 0)),
        compiler_params=pltpu.CompilerParams(
            dimension_semantics=("parallel",)),  # v7x: shard stacked calls over both TCs
        cost_estimate=pl.CostEstimate(
            flops=flops,
            transcendentals=transcendentals,
            bytes_accessed=bytes_accessed),
    )(states, w1, w2, wh, b_all)

    a_prob = out[..., :nA]
    log_prob = out[..., nA:2 * nA]
    v = out[..., 2 * nA:2 * nA + 1]
    return a_prob, log_prob, v


def ppo_net_forward_stacked(states, packed):
    """N independent PPO_net forwards: states (N, B, nS)."""
    return _ppo_forward_stacked(states, packed["w1"], packed["w2"],
                                packed["wh"], packed["b_all"], nA=packed["nA"])


def ppo_net_forward(state, packed):
    """Single PPO_net forward: state (B, nS) -> (a_prob, log_prob, v)."""
    a, lg, v = _ppo_forward_stacked(state[None], packed["w1"], packed["w2"],
                                    packed["wh"], packed["b_all"], nA=packed["nA"])
    return a[0], lg[0], v[0]


def ppo_net_reference(state, params):
    """Pure-JAX reference mirroring the PyTorch forward (single call)."""
    h1 = jnp.maximum(state @ params["w1"] + params["b1"], 0.0)
    h2 = jnp.maximum(h1 @ params["w2"] + params["b2"], 0.0)
    logits = h2 @ params["wa"] + params["ba"]
    a_prob = jax.nn.softmax(logits, axis=0)          # dim=0 as in torch code
    log_prob = jnp.log(logits)
    v = h2 @ params["wc"] + params["bc"]
    return a_prob, log_prob, v


if __name__ == "__main__":
    N_CALLS, B, nS, nA = 16, 8, 32, 4
    hidden_dims = (256, 128)

    key = jax.random.PRNGKey(0)
    k_state, k_params = jax.random.split(key)

    states = jax.random.normal(k_state, (N_CALLS, B, nS), jnp.float32)
    params = make_params(k_params, nS, nA, hidden_dims)
    packed = pack_params(params, nA)

    # stacked (rollout-style) path: one gridded kernel for all N calls
    a_prob, log_prob, v = ppo_net_forward_stacked(states, packed)
    jax.block_until_ready((a_prob, log_prob, v))

    # single-call path (same kernel, N=1)
    a1, l1, v1 = ppo_net_forward(states[0], packed)
    jax.block_until_ready((a1, l1, v1))

    # sanity check vs pure-JAX reference (per-call, since softmax is per-call dim=0)
    ra, rl, rv = jax.vmap(lambda s: ppo_net_reference(s, params))(states)
    assert jnp.allclose(a_prob, ra, atol=1e-5, rtol=1e-5)
    assert jnp.allclose(v, rv, atol=1e-5, rtol=1e-5)
    # log of raw logits: NaN where logits < 0, faithfully reproduced
    assert jnp.allclose(jnp.nan_to_num(log_prob), jnp.nan_to_num(rl), atol=1e-5, rtol=1e-5)
    assert jnp.allclose(a1, ra[0], atol=1e-5, rtol=1e-5)
    assert jnp.allclose(v1, rv[0], atol=1e-5, rtol=1e-5)

    print("KERNEL_OK")
</pallas_src>

<mosaic_0001>
module attributes {stable_mosaic.version = 11 : i64} {
  func.func @ppo_net_kernel(%arg0: i32, %arg1: memref<1x8x32xf32, #tpu.memory_space<vmem>>, %arg2: memref<32x256xf32, #tpu.memory_space<vmem>>, %arg3: memref<256x128xf32, #tpu.memory_space<vmem>>, %arg4: memref<128x128xf32, #tpu.memory_space<vmem>>, %arg5: memref<1x512xf32, #tpu.memory_space<vmem>>, %arg6: memref<1x8x128xf32, #tpu.memory_space<vmem>>) attributes {dimension_semantics = [#tpu.dimension_semantics<parallel>], iteration_bounds = array<i64: 16>, scalar_prefetch = 0 : i64, scratch_operands = 0 : i64, tpu.core_type = #tpu.core_type<tc>, window_params = [{transform_indices = @transform_0, window_bounds = array<i64: 1, 8, 32>}, {pipeline_mode = #tpu.pipeline_mode<synchronous>, transform_indices = @transform_1, window_bounds = array<i64: 32, 256>}, {pipeline_mode = #tpu.pipeline_mode<synchronous>, transform_indices = @transform_2, window_bounds = array<i64: 256, 128>}, {pipeline_mode = #tpu.pipeline_mode<synchronous>, transform_indices = @transform_3, window_bounds = array<i64: 128, 128>}, {pipeline_mode = #tpu.pipeline_mode<synchronous>, transform_indices = @transform_4, window_bounds = array<i64: 1, 512>}, {transform_indices = @transform_5, window_bounds = array<i64: 1, 8, 128>}]} {
    %c0 = arith.constant 0 : index
    %c0_0 = arith.constant 0 : index
    %c0_1 = arith.constant 0 : index
    %0 = vector.load %arg1[%c0, %c0_0, %c0_1] : memref<1x8x32xf32, #tpu.memory_space<vmem>>, vector<1x8x32xf32>
    %1 = vector.shape_cast %0 : vector<1x8x32xf32> to vector<8x32xf32>
    %c0_2 = arith.constant 0 : index
    %c0_3 = arith.constant 0 : index
    %2 = vector.load %arg5[%c0_2, %c0_3] : memref<1x512xf32, #tpu.memory_space<vmem>>, vector<1x256xf32>
    %c0_4 = arith.constant 0 : index
    %c256 = arith.constant 256 : index
    %3 = vector.load %arg5[%c0_4, %c256] : memref<1x512xf32, #tpu.memory_space<vmem>>, vector<1x128xf32>
    %c0_5 = arith.constant 0 : index
    %c384 = arith.constant 384 : index
    %4 = vector.load %arg5[%c0_5, %c384] : memref<1x512xf32, #tpu.memory_space<vmem>>, vector<1x128xf32>
    %c0_6 = arith.constant 0 : index
    %c0_7 = arith.constant 0 : index
    %5 = vector.load %arg2[%c0_6, %c0_7] : memref<32x256xf32, #tpu.memory_space<vmem>>, vector<32x256xf32>
    %cst = arith.constant dense<0.000000e+00> : vector<8x256xf32>
    %6 = tpu.matmul %1, %5, %cst {dimension_numbers = #tpu.dot_dimension_numbers<[1], [0], [0], [1], [0, 0, 1, 1], [], []>} : vector<8x32xf32>, vector<32x256xf32>, vector<8x256xf32> -> vector<8x256xf32>
    %7 = vector.broadcast %2 : vector<1x256xf32> to vector<8x256xf32>
    %8 = arith.addf %6, %7 : vector<8x256xf32>
    %cst_8 = arith.constant 0.000000e+00 : f32
    %9 = vector.broadcast %cst_8 : f32 to vector<8x256xf32>
    %10 = arith.maximumf %8, %9 : vector<8x256xf32>
    %c0_9 = arith.constant 0 : index
    %c0_10 = arith.constant 0 : index
    %11 = vector.load %arg3[%c0_9, %c0_10] : memref<256x128xf32, #tpu.memory_space<vmem>>, vector<256x128xf32>
    %cst_11 = arith.constant dense<0.000000e+00> : vector<8x128xf32>
    %12 = tpu.matmul %10, %11, %cst_11 {dimension_numbers = #tpu.dot_dimension_numbers<[1], [0], [0], [1], [0, 0, 1, 1], [], []>} : vector<8x256xf32>, vector<256x128xf32>, vector<8x128xf32> -> vector<8x128xf32>
    %13 = vector.broadcast %3 : vector<1x128xf32> to vector<8x128xf32>
    %14 = arith.addf %12, %13 : vector<8x128xf32>
    %cst_12 = arith.constant 0.000000e+00 : f32
    %15 = vector.broadcast %cst_12 : f32 to vector<8x128xf32>
    %16 = arith.maximumf %14, %15 : vector<8x128xf32>
    %c0_13 = arith.constant 0 : index
    %c0_14 = arith.constant 0 : index
    %17 = vector.load %arg4[%c0_13, %c0_14] : memref<128x128xf32, #tpu.memory_space<vmem>>, vector<128x128xf32>
    %cst_15 = arith.constant dense<0.000000e+00> : vector<8x128xf32>
    %18 = tpu.matmul %16, %17, %cst_15 {dimension_numbers = #tpu.dot_dimension_numbers<[1], [0], [0], [1], [0, 0, 1, 1], [], []>} : vector<8x128xf32>, vector<128x128xf32>, vector<8x128xf32> -> vector<8x128xf32>
    %19 = vector.broadcast %4 : vector<1x128xf32> to vector<8x128xf32>
    %20 = arith.addf %18, %19 : vector<8x128xf32>
    %cst_16 = arith.constant dense<0xFF800000> : vector<128xf32>
    %21 = vector.multi_reduction <maximumf>, %20, %cst_16 [0] : vector<8x128xf32> to vector<128xf32>
    %22 = vector.shape_cast %21 : vector<128xf32> to vector<1x128xf32>
    %23 = vector.broadcast %22 : vector<1x128xf32> to vector<8x128xf32>
    %24 = arith.subf %20, %23 : vector<8x128xf32>
    %25 = math.exp %24 : vector<8x128xf32>
    %cst_17 = arith.constant dense<0.000000e+00> : vector<128xf32>
    %26 = vector.multi_reduction <add>, %25, %cst_17 [0] : vector<8x128xf32> to vector<128xf32>
    %27 = vector.shape_cast %26 : vector<128xf32> to vector<1x128xf32>
    %28 = vector.broadcast %27 : vector<1x128xf32> to vector<8x128xf32>
    %29 = arith.divf %25, %28 : vector<8x128xf32>
    %30 = math.log %20 : vector<8x128xf32>
    %31 = tpu.iota {dimensions = array<i32: 1>} : vector<8x128xi32>
    %c4_i32 = arith.constant 4 : i32
    %32 = vector.broadcast %c4_i32 : i32 to vector<8x128xi32>
    %33 = arith.cmpi slt, %31, %32 : vector<8x128xi32>
    %c8_i32 = arith.constant 8 : i32
    %34 = vector.broadcast %c8_i32 : i32 to vector<8x128xi32>
    %35 = arith.cmpi slt, %31, %34 : vector<8x128xi32>
    %36 = arith.select %35, %30, %20 : vector<8x128xi1>, vector<8x128xf32>
    %37 = arith.select %33, %29, %36 : vector<8x128xi1>, vector<8x128xf32>
    %c0_18 = arith.constant 0 : index
    %c0_19 = arith.constant 0 : index
    %c0_20 = arith.constant 0 : index
    %38 = vector.load %arg6[%c0_18, %c0_19, %c0_20] : memref<1x8x128xf32, #tpu.memory_space<vmem>>, vector<1x8x128xf32>
    %39 = vector.shape_cast %38 : vector<1x8x128xf32> to vector<8x128xf32>
    %40 = vector.shape_cast %37 : vector<8x128xf32> to vector<1x8x128xf32>
    tpu.vector_store %arg6[%c0_18, %c0_19, %c0_20], %40 {strides = array<i32>} : memref<1x8x128xf32, #tpu.memory_space<vmem>>, vector<1x8x128xf32>,
    return
  }
  func.func @transform_0(%arg0: i32) -> (i32, i32, i32) {
    %c0_i32 = arith.constant 0 : i32
    %c0_i32_0 = arith.constant 0 : i32
    %c0_i32_1 = arith.constant 0 : i32
    return %arg0, %c0_i32, %c0_i32_0 : i32, i32, i32
  }
  func.func @transform_1(%arg0: i32) -> (i32, i32) {
    %c0_i32 = arith.constant 0 : i32
    %c0_i32_0 = arith.constant 0 : i32
    %c0_i32_1 = arith.constant 0 : i32
    return %c0_i32, %c0_i32_0 : i32, i32
  }
  func.func @transform_2(%arg0: i32) -> (i32, i32) {
    %c0_i32 = arith.constant 0 : i32
    %c0_i32_0 = arith.constant 0 : i32
    %c0_i32_1 = arith.constant 0 : i32
    return %c0_i32, %c0_i32_0 : i32, i32
  }
  func.func @transform_3(%arg0: i32) -> (i32, i32) {
    %c0_i32 = arith.constant 0 : i32
    %c0_i32_0 = arith.constant 0 : i32
    %c0_i32_1 = arith.constant 0 : i32
    return %c0_i32, %c0_i32_0 : i32, i32
  }
  func.func @transform_4(%arg0: i32) -> (i32, i32) {
    %c0_i32 = arith.constant 0 : i32
    %c0_i32_0 = arith.constant 0 : i32
    %c0_i32_1 = arith.constant 0 : i32
    return %c0_i32, %c0_i32_0 : i32, i32
  }
  func.func @transform_5(%arg0: i32) -> (i32, i32, i32) {
    %c0_i32 = arith.constant 0 : i32
    %c0_i32_0 = arith.constant 0 : i32
    %c0_i32_1 = arith.constant 0 : i32
    return %arg0, %c0_i32, %c0_i32_0 : i32, i32, i32
  }
}

</mosaic_0001>

<llo_original>
// kernel: _ppo_forward_stacked.1
$region0: #{_ppo_forward_stacked.1}
  #allocation0 [shape = 'u32[]', space=smem, size = 0x4, offset = 0x4, fixed_abs, tag = 'smem constant byte address 0x4 - core index']
  #allocation1 [shape = 'u32[144,128]{1,0:T(1,128)}', space=vmem, size = 0x12000, scoped, tag = 'internal scratch']
  %s0 = inlined_call_operand.hbm [shape: f32[16,8,32], index: 0, kind: input, shape index: {}]
  %s1 = inlined_call_operand.hbm [shape: f32[32,256], index: 1, kind: input, shape index: {}]
  %s2 = inlined_call_operand.hbm [shape: f32[256,128], index: 2, kind: input, shape index: {}]
  %s3 = inlined_call_operand.hbm [shape: f32[128,128], index: 3, kind: input, shape index: {}]
  %s4 = inlined_call_operand.vmem [shape: f32[1,512], index: 4, kind: input, shape index: {}]
  %s5 = inlined_call_operand.vmem [shape: f32[16,8,128], index: 5, kind: output, shape index: {}]
  %s6 = sld [smem:[#allocation0]]
  $region69: #{_ppo_forward_stacked.1} parent=0
    _
  %s8 = ssub.s32 1, %s6
  %s9 = scalar_select 0, %s8, %s6
  $region1: #{_ppo_forward_stacked.1} parent=0
    #allocation2 [shape = 'u8[8192]{0}', space=vmem, size = 0x2000, scoped, tag = 'input window, operand 0']
    #allocation3 [shape = 's32[2]{0}', space=sflag, size = 0x8, scoped, tag = 'scoped memory for _ppo_forward_stacked.1']
    #allocation4 [shape = 'u8[32768]{0}', space=vmem, size = 0x8000, scoped, tag = 'input window, operand 1, single buffered']
    #allocation5 [shape = 's32[1]{0}', space=sflag, size = 0x4, scoped, tag = 'scoped memory for _ppo_forward_stacked.1']
    #allocation6 [shape = 'u8[131072]{0}', space=vmem, size = 0x20000, scoped, tag = 'input window, operand 2, single buffered']
    #allocation7 [shape = 'u8[65536]{0}', space=vmem, size = 0x10000, scoped, tag = 'input window, operand 3, single buffered']
    #allocation8 [shape = 's32[1]{0}', space=sflag, size = 0x4, scoped, tag = 'scoped memory for _ppo_forward_stacked.1']
    %10 = vsyncpa [#allocation3], 0
    %s11 = scalar_lea.sflag [#allocation3], 1
    %12 = vsyncpa %s11, 0
    %13 = vsyncpa [#allocation5], 0
    %14 = vsyncpa [#allocation8], 0
    loop: start=0, step=1, limit=18
    $region2: #{_ppo_forward_stacked.1} parent=1 // loop_pre_header
      _
    $region3: #{_ppo_forward_stacked.1} parent=1 // loop_header
      %s16 = sphi 0, %s20
      %p17 = scmp.ge.s32.totalorder %s16, 18
      %s26 = sphi 0, %s28
      %s29 = sphi 0, %s26
      %s30 = sphi 0, %s29
      %s46 = sphi 0, %s30
      %s50 = sphi 0, %s50
      %s52 = sphi 0, %s50
      %s53 = sphi 0, %s52
      %s67 = sphi 0, %s53
      %s71 = sphi 0, %s71
      %s73 = sphi 0, %s71
      %s74 = sphi 0, %s73
      %s88 = sphi 0, %s74
      %s92 = sphi 0, %s92
      %s94 = sphi 0, %s92
      %s95 = sphi 0, %s94
      %s109 = sphi 0, %s95
      %s113 = sphi 0, %s113
      %s115 = sphi 0, %s113
      %s116 = sphi 0, %s115
      %s130 = sphi 0, %s116
      %s136 = sphi 0, %s138
      %s139 = sphi 0, %s136
      %s140 = sphi 0, %s139
      %s156 = sphi 0, %s140
    $region4: #{_ppo_forward_stacked.1} parent=1 // loop_header_branch
      %19 = sbr.rel (%p17) target = $region8
    $region5: #{_ppo_forward_stacked.1} parent=1 // loop_body
      %s21 = ssub.s32 %s16, 1
      %s22 = ssub.s32 %s16, 2
      %s23 = sadd.s32 %s16, 1
      %s24 = ssub.s32 %s16, %s23
      %p25 = scmp.eq.s32.totalorder %s24, 0
      %s27 = sadd.s32 %s26, 1
      %s28 = scalar_select %p25, %s26, %s27
      %p31 = pneg %p25
      %p32 = scmp.eq.s32.totalorder %s16, 15
      %p33 = por %p31, %p32
      %p34 = scmp.ne.s32.totalorder %s26, %s29
      %p35 = scmp.eq.s32.totalorder %s16, 0
      %p36 = por %p34, %p35
      %p37 = scmp.ne.s32.totalorder %s26, %s29
      %p38 = scmp.eq.s32.totalorder %s21, 15
      %p39 = por %p37, %p38
      %p40 = scmp.ne.s32.totalorder %s29, %s30
      %p41 = scmp.eq.s32.totalorder %s21, 0
      %p42 = por %p40, %p41
      %p43 = scmp.ne.s32.totalorder %s29, %s30
      %p44 = scmp.eq.s32.totalorder %s22, 15
      %p45 = por %p43, %p44
      %p47 = scmp.ne.s32.totalorder %s30, %s46
      %p48 = scmp.eq.s32.totalorder %s22, 0
      %p49 = por %p47, %p48
      %s51 = sadd.s32 %s50, 1
      %p54 = scmp.eq.s32.totalorder %s16, 15
      %p55 = scmp.ne.s32.totalorder %s50, %s52
      %p56 = scmp.eq.s32.totalorder %s16, 0
      %p57 = por %p55, %p56
      %p58 = scmp.ne.s32.totalorder %s50, %s52
      %p59 = scmp.eq.s32.totalorder %s21, 15
      %p60 = por %p58, %p59
      %p61 = scmp.ne.s32.totalorder %s52, %s53
      %p62 = scmp.eq.s32.totalorder %s21, 0
      %p63 = por %p61, %p62
      %p64 = scmp.ne.s32.totalorder %s52, %s53
      %p65 = scmp.eq.s32.totalorder %s22, 15
      %p66 = por %p64, %p65
      %p68 = scmp.ne.s32.totalorder %s53, %s67
      %p69 = scmp.eq.s32.totalorder %s22, 0
      %p70 = por %p68, %p69
      %s72 = sadd.s32 %s71, 1
      %p75 = scmp.eq.s32.totalorder %s16, 15
      %p76 = scmp.ne.s32.totalorder %s71, %s73
      %p77 = scmp.eq.s32.totalorder %s16, 0
      %p78 = por %p76, %p77
      %p79 = scmp.ne.s32.totalorder %s71, %s73
      %p80 = scmp.eq.s32.totalorder %s21, 15
      %p81 = por %p79, %p80
      %p82 = scmp.ne.s32.totalorder %s73, %s74
      %p83 = scmp.eq.s32.totalorder %s21, 0
      %p84 = por %p82, %p83
      %p85 = scmp.ne.s32.totalorder %s73, %s74
      %p86 = scmp.eq.s32.totalorder %s22, 15
      %p87 = por %p85, %p86
      %p89 = scmp.ne.s32.totalorder %s74, %s88
      %p90 = scmp.eq.s32.totalorder %s22, 0
      %p91 = por %p89, %p90
      %s93 = sadd.s32 %s92, 1
      %p96 = scmp.eq.s32.totalorder %s16, 15
      %p97 = scmp.ne.s32.totalorder %s92, %s94
      %p98 = scmp.eq.s32.totalorder %s16, 0
      %p99 = por %p97, %p98
      %p100 = scmp.ne.s32.totalorder %s92, %s94
      %p101 = scmp.eq.s32.totalorder %s21, 15
      %p102 = por %p100, %p101
      %p103 = scmp.ne.s32.totalorder %s94, %s95
      %p104 = scmp.eq.s32.totalorder %s21, 0
      %p105 = por %p103, %p104
      %p106 = scmp.ne.s32.totalorder %s94, %s95
      %p107 = scmp.eq.s32.totalorder %s22, 15
      %p108 = por %p106, %p107
      %p110 = scmp.ne.s32.totalorder %s95, %s109
      %p111 = scmp.eq.s32.totalorder %s22, 0
      %p112 = por %p110, %p111
      %s114 = sadd.s32 %s113, 1
      %p117 = scmp.eq.s32.totalorder %s16, 15
      %p118 = scmp.ne.s32.totalorder %s113, %s115
      %p119 = scmp.eq.s32.totalorder %s16, 0
      %p120 = por %p118, %p119
      %p121 = scmp.ne.s32.totalorder %s113, %s115
      %p122 = scmp.eq.s32.totalorder %s21, 15
      %p123 = por %p121, %p122
      %p124 = scmp.ne.s32.totalorder %s115, %s116
      %p125 = scmp.eq.s32.totalorder %s21, 0
      %p126 = por %p124, %p125
      %p127 = scmp.ne.s32.totalorder %s115, %s116
      %p128 = scmp.eq.s32.totalorder %s22, 15
      %p129 = por %p127, %p128
      %p131 = scmp.ne.s32.totalorder %s116, %s130
      %p132 = scmp.eq.s32.totalorder %s22, 0
      %p133 = por %p131, %p132
      %s134 = ssub.s32 %s16, %s23
      %p135 = scmp.eq.s32.totalorder %s134, 0
      %s137 = sadd.s32 %s136, 1
      %s138 = scalar_select %p135, %s136, %s137
      %p141 = pneg %p135
      %p142 = scmp.eq.s32.totalorder %s16, 15
      %p143 = por %p141, %p142
      %p144 = scmp.ne.s32.totalorder %s136, %s139
      %p145 = scmp.eq.s32.totalorder %s16, 0
      %p146 = por %p144, %p145
      %p147 = scmp.ne.s32.totalorder %s136, %s139
      %p148 = scmp.eq.s32.totalorder %s21, 15
      %p149 = por %p147, %p148
      %p150 = scmp.ne.s32.totalorder %s139, %s140
      %p151 = scmp.eq.s32.totalorder %s21, 0
      %p152 = por %p150, %p151
      %p153 = scmp.ne.s32.totalorder %s139, %s140
      %p154 = scmp.eq.s32.totalorder %s22, 15
      %p155 = por %p153, %p154
      %p157 = scmp.ne.s32.totalorder %s140, %s156
      %p158 = scmp.eq.s32.totalorder %s22, 0
      %p159 = por %p157, %p158
      %p160 = scmp.le.s32.totalorder 1, %s16
      %p161 = scmp.lt.s32.totalorder %s16, 17
      %p162 = pnand %p160, %p161
      %p163 = pneg %p162
      // Predicated region
      $region9: #{_ppo_forward_stacked.1} parent=5 // pred_check
        _
      $region10: #{_ppo_forward_stacked.1} parent=5 // pred_check_branch
        %165 = sbr.rel (%p162) target = $region12
      $region11: #{_ppo_forward_stacked.1} parent=5 // pred_region
        %s166 = ssub.s32 %s16, 1
        // Predicated region
        $region13: #{_ppo_forward_stacked.1} parent=11 // pred_check
          %p167 = pneg %p63
        $region14: #{_ppo_forward_stacked.1} parent=11 // pred_check_branch
          %169 = sbr.rel (%p167) target = $region16
        $region15: #{_ppo_forward_stacked.1} parent=11 // pred_region
          %s171 = ssub.s32 1024, 1024
          %172 = vsyncadd [#allocation5], %s171
          %s173 = sshll.u32 [#allocation4], 4
          %s174 = int_to_ptr.vmem [resolvable:$true] %s173
          %179 = dma.hbm_to_vmem [thread:$0]  %s1, 1024, %s174, [#allocation5], 256, 256, 16
        $region16: #{_ppo_forward_stacked.1} parent=11 // pred_fallthru
          _
        // Predicated region
        $region17: #{_ppo_forward_stacked.1} parent=11 // pred_check
          %p180 = pneg %p84
        $region18: #{_ppo_forward_stacked.1} parent=11 // pred_check_branch
          %182 = sbr.rel (%p180) target = $region20
        $region19: #{_ppo_forward_stacked.1} parent=11 // pred_region
          %s184 = ssub.s32 4096, 4096
          %185 = vsyncadd [#allocation5], %s184
          %s186 = sshll.u32 [#allocation6], 4
          %s187 = int_to_ptr.vmem [resolvable:$true] %s186
          %192 = dma.hbm_to_vmem [thread:$0]  %s2, 4096, %s187, [#allocation5], 128, 128, 8
        $region20: #{_ppo_forward_stacked.1} parent=11 // pred_fallthru
          _
        // Predicated region
        $region21: #{_ppo_forward_stacked.1} parent=11 // pred_check
          %p193 = pneg %p105
        $region22: #{_ppo_forward_stacked.1} parent=11 // pred_check_branch
          %195 = sbr.rel (%p193) target = $region24
        $region23: #{_ppo_forward_stacked.1} parent=11 // pred_region
          %s197 = ssub.s32 2048, 2048
          %198 = vsyncadd [#allocation8], %s197
          %s199 = sshll.u32 [#allocation7], 4
          %s200 = int_to_ptr.vmem [resolvable:$true] %s199
          %205 = dma.hbm_to_vmem [thread:$0]  %s3, 2048, %s200, [#allocation8], 128, 128, 8
        $region24: #{_ppo_forward_stacked.1} parent=11 // pred_fallthru
          _
        // Predicated region
        $region25: #{_ppo_forward_stacked.1} parent=11 // pred_check
          %p206 = pneg %p126
        $region26: #{_ppo_forward_stacked.1} parent=11 // pred_check_branch
          %208 = sbr.rel (%p206) target = $region28
        $region27: #{_ppo_forward_stacked.1} parent=11 // pred_region
          _
        $region28: #{_ppo_forward_stacked.1} parent=11 // pred_fallthru
          _
      $region12: #{_ppo_forward_stacked.1} parent=5 // pred_fallthru
        _
      %p209 = scmp.lt.s32.totalorder %s16, 16
      // Predicated region
      $region29: #{_ppo_forward_stacked.1} parent=5 // pred_check
        %p210 = pneg %p209
      $region30: #{_ppo_forward_stacked.1} parent=5 // pred_check_branch
        %212 = sbr.rel (%p210) target = $region32
      $region31: #{_ppo_forward_stacked.1} parent=5 // pred_region
        // Predicated region
        $region33: #{_ppo_forward_stacked.1} parent=31 // pred_check
          %p213 = pneg %p36
        $region34: #{_ppo_forward_stacked.1} parent=31 // pred_check_branch
          %215 = sbr.rel (%p213) target = $region36
        $region35: #{_ppo_forward_stacked.1} parent=31 // pred_region
          %s216 = sand.u32 %s26, 1
          %s217 = scalar_lea.sflag [#allocation3], %s216
          %s218 = sand.u32 %s26, 1
          %s219 = smul.addr %s218, 8
          %s220 = scalar_lea.vmem [#allocation2], %s219
          %s222 = ssub.s32 128, 128
          %223 = vsyncadd %s217, %s222
          %s224 = smul.addr %s16, 128
          %s225 = scalar_lea.hbm %s0, %s224
          %s227 = sshll.u32 %s220, 4
          %s228 = int_to_ptr.vmem [resolvable:$true] %s227
          %230 = dma.hbm_to_vmem [thread:$0]  %s225, 128, %s228, %s217
        $region36: #{_ppo_forward_stacked.1} parent=31 // pred_fallthru
          _
      $region32: #{_ppo_forward_stacked.1} parent=5 // pred_fallthru
        _
      %p231 = scmp.le.s32.totalorder 1, %s16
      %p232 = scmp.lt.s32.totalorder %s16, 17
      %p233 = pnand %p231, %p232
      %p234 = pneg %p233
      // Predicated region
      $region37: #{_ppo_forward_stacked.1} parent=5 // pred_check
        _
      $region38: #{_ppo_forward_stacked.1} parent=5 // pred_check_branch
        %236 = sbr.rel (%p233) target = $region40
      $region39: #{_ppo_forward_stacked.1} parent=5 // pred_region
        %s237 = ssub.s32 %s16, 1
        %s238 = sand.u32 %s29, 1
        %s239 = scalar_lea.sflag [#allocation3], %s238
        %s240 = sand.u32 %s29, 1
        %s241 = smul.addr %s240, 8
        %s242 = scalar_lea.vmem [#allocation2], %s241
        // Predicated region
        $region41: #{_ppo_forward_stacked.1} parent=39 // pred_check
          %p243 = pneg %p42
        $region42: #{_ppo_forward_stacked.1} parent=39 // pred_check_branch
          %245 = sbr.rel (%p243) target = $region44
        $region43: #{_ppo_forward_stacked.1} parent=39 // pred_region
          %246 = dma.done %s239, 128
        $region44: #{_ppo_forward_stacked.1} parent=39 // pred_fallthru
          _
        // Predicated region
        $region45: #{_ppo_forward_stacked.1} parent=39 // pred_check
          %p247 = pneg %p63
        $region46: #{_ppo_forward_stacked.1} parent=39 // pred_check_branch
          %249 = sbr.rel (%p247) target = $region48
        $region47: #{_ppo_forward_stacked.1} parent=39 // pred_region
          %250 = dma.done [#allocation5], 1024
        $region48: #{_ppo_forward_stacked.1} parent=39 // pred_fallthru
          _
        // Predicated region
        $region49: #{_ppo_forward_stacked.1} parent=39 // pred_check
          %p251 = pneg %p84
        $region50: #{_ppo_forward_stacked.1} parent=39 // pred_check_branch
          %253 = sbr.rel (%p251) target = $region52
        $region51: #{_ppo_forward_stacked.1} parent=39 // pred_region
          %254 = dma.done [#allocation5], 4096
        $region52: #{_ppo_forward_stacked.1} parent=39 // pred_fallthru
          _
        // Predicated region
        $region53: #{_ppo_forward_stacked.1} parent=39 // pred_check
          %p255 = pneg %p105
        $region54: #{_ppo_forward_stacked.1} parent=39 // pred_check_branch
          %257 = sbr.rel (%p255) target = $region56
        $region55: #{_ppo_forward_stacked.1} parent=39 // pred_region
          %258 = dma.done [#allocation8], 2048
        $region56: #{_ppo_forward_stacked.1} parent=39 // pred_fallthru
          _
        %s259 = sand.u32 %s29, 1
        %s260 = scalar_lea.sflag [#allocation3], %s259
        %s261 = sand.u32 %s29, 1
        %s262 = smul.addr %s261, 8
        %s263 = scalar_lea.vmem [#allocation2], %s262
        %p264 = pneg %p42
        %p265 = pneg %p39
        %p266 = pneg %p63
        %p267 = pneg %p60
        %p268 = pneg %p84
        %p269 = pneg %p81
        %p270 = pneg %p105
        %p271 = pneg %p102
        %p272 = pneg %p126
        %p273 = pneg %p123
        %p274 = pneg %p152
        %p275 = pneg %p149
        %p276 = scmp.lt.s32.totalorder %s21, 15
        %s277 = scalar_select %p276, %s21, 15
        %s278 = smul.addr %s277, 8
        %s279 = scalar_lea.vmem %s5, %s278
        %p280 = scmp.lt.s32.totalorder %s21, 15
        %s281 = scalar_select %p280, %s21, 15
        %s282 = smul.addr %s281, 8
        %s283 = scalar_lea.vmem %s5, %s282
        %v284 = vld [vmem:[%s242] sm:$0xff]
        %v285 = vld [vmem:[%s4] sm:$0x3]
        %v286 = vld [vmem:[%s4 + $0x2] sm:$0x1]
        %v287 = vld [vmem:[%s4 + $0x3] sm:$0x1]
        %v288 = vld [vmem:[#allocation4] sm:$0xff]
        %v289 = vld [vmem:[#allocation4 + $0x8] sm:$0xff]
        %v290 = vld [vmem:[#allocation4 + $0x10] sm:$0xff]
        %v291 = vld [vmem:[#allocation4 + $0x18] sm:$0xff]
        %v292 = vld [vmem:[#allocation4 + $0x20] sm:$0xff]
        %v293 = vld [vmem:[#allocation4 + $0x28] sm:$0xff]
        %v294 = vld [vmem:[#allocation4 + $0x30] sm:$0xff]
        %v295 = vld [vmem:[#allocation4 + $0x38] sm:$0xff]
        %v297 = vlaneseq
        %v298 = vshrl.u32 %v297, 7
        %v299 = vsub.s32 0, %v298
        %v300 = vrot.slane %v285, %v299
        %v301 = vlaneseq
        %v302 = vshrl.u32 %v301, 7
        %v303 = vsub.s32 1, %v302
        %v304 = vrot.slane %v285, %v303
        %vm307 = vcmask 261120
        %v309 = vsel %vm307, %v284, 0
        %311 = vmatprep.subr.mxu0 %v289
        %312 = vmatpush1.msra.mxu0 %v288
        %313 = vmatprep.subr.mxu0 %v291
        %314 = vmatpush1.msra.mxu0 %v290
        %315 = vmatprep.subr.mxu0 %v293
        %316 = vmatpush1.msra.mxu0 %v292
        %317 = vmatprep.subr.mxu0 %v295
        %318 = vmatpush1.msra.mxu0 %v294
        %319 = vmatprep.subr.mxu0 0.0
        %320 = vmatpush1.msra.mxu0 0.0
        %321 = vmatprep.subr.mxu0 0.0
        %322 = vmatpush1.msra.mxu0 0.0
        %323 = vmatprep.subr.mxu0 0.0
        %324 = vmatpush1.msra.mxu0 0.0
        %325 = vmatprep.subr.mxu0 0.0
        %326 = vmatpush1.msra.mxu0 0.0
        %327 = vmatprep.subr.mxu0 0.0
        %328 = vmatpush1.msra.mxu0 0.0
        %329 = vmatprep.subr.mxu0 0.0
        %330 = vmatpush1.msra.mxu0 0.0
        %331 = vmatprep.subr.mxu0 0.0
        %332 = vmatpush1.msra.mxu0 0.0
        %333 = vmatprep.subr.mxu0 0.0
        %334 = vmatpush1.msra.mxu0 0.0
        %335 = vmatprep.subr.mxu0 0.0
        %336 = vmatpush1.msra.mxu0 0.0
        %337 = vmatprep.subr.mxu0 0.0
        %338 = vmatpush1.msra.mxu0 0.0
        %339 = vmatprep.subr.mxu0 0.0
        %340 = vmatpush1.msra.mxu0 0.0
        %341 = vmatprep.subr.mxu0 0.0
        %342 = vmatpush1.msra.mxu0 0.0
        %343 = vmatprep.subr.mxu0 0.0
        %344 = vmatpush1.msra.mxu0 0.0
        %345 = vmatprep.subr.mxu0 0.0
        %346 = vmatpush1.msra.mxu0 0.0
        %347 = vmatprep.subr.mxu0 0.0
        %348 = vmatpush1.msra.mxu0 0.0
        %349 = vmatprep.subr.mxu0 0.0
        %350 = vmatpush1.msra.mxu0 0.0
        %351 = vmatprep.subr.mxu0 0.0
        %352 = vmatpush1.msra.mxu0 0.0
        %353 = vmatprep.subr.mxu0 0.0
        %354 = vmatpush1.msra.mxu0 0.0
        %355 = vmatprep.subr.mxu0 0.0
        %356 = vmatpush1.msra.mxu0 0.0
        %357 = vmatprep.subr.mxu0 0.0
        %358 = vmatpush1.msra.mxu0 0.0
        %359 = vmatprep.subr.mxu0 0.0
        %360 = vmatpush1.msra.mxu0 0.0
        %361 = vmatprep.subr.mxu0 0.0
        %362 = vmatpush1.msra.mxu0 0.0
        %363 = vmatprep.subr.mxu0 0.0
        %364 = vmatpush1.msra.mxu0 0.0
        %365 = vmatprep.subr.mxu0 0.0
        %366 = vmatpush1.msra.mxu0 0.0
        %367 = vmatprep.subr.mxu0 0.0
        %368 = vmatpush1.msra.mxu0 0.0
        %369 = vmatprep.subr.mxu0 0.0
        %370 = vmatpush1.msra.mxu0 0.0
        %371 = vmatprep.subr.mxu0 0.0
        %372 = vmatpush1.msra.mxu0 0.0
        %373 = vmatprep.subr.mxu0 0.0
        %374 = vmatpush1.msra.mxu0 0.0
        %375 = vmatprep.mubr.f32.mxu0 0.0
        %376 = vmatmul.mubr.f32.gmra.mrb[0].mxu0 %v309
        %v377 = vpop.f32.mrb[0].mxu0
        %v378 = vadd.f32 %v300, %v377
        %v379 = vpop.f32.mrb[0].mxu0
        %v380 = vadd.f32 %v304, %v379
        %381 = vdwg.mxu0
        %v382 = vmax.f32 %v378, 0.0
        %v383 = vmax.f32 %v380, 0.0
        %v384 = vld [vmem:[#allocation6] sm:$0xff]
        %v385 = vld [vmem:[#allocation6 + $0x8] sm:$0xff]
        %v386 = vld [vmem:[#allocation6 + $0x10] sm:$0xff]
        %v387 = vld [vmem:[#allocation6 + $0x18] sm:$0xff]
        %v388 = vld [vmem:[#allocation6 + $0x20] sm:$0xff]
        %v389 = vld [vmem:[#allocation6 + $0x28] sm:$0xff]
        %v390 = vld [vmem:[#allocation6 + $0x30] sm:$0xff]
        %v391 = vld [vmem:[#allocation6 + $0x38] sm:$0xff]
        %v392 = vld [vmem:[#allocation6 + $0x40] sm:$0xff]
        %v393 = vld [vmem:[#allocation6 + $0x48] sm:$0xff]
        %v394 = vld [vmem:[#allocation6 + $0x50] sm:$0xff]
        %v395 = vld [vmem:[#allocation6 + $0x58] sm:$0xff]
        %v396 = vld [vmem:[#allocation6 + $0x60] sm:$0xff]
        %v397 = vld [vmem:[#allocation6 + $0x68] sm:$0xff]
        %v398 = vld [vmem:[#allocation6 + $0x70] sm:$0xff]
        %v399 = vld [vmem:[#allocation6 + $0x78] sm:$0xff]
        %v400 = vld [vmem:[#allocation6 + $0x80] sm:$0xff]
        %v401 = vld [vmem:[#allocation6 + $0x88] sm:$0xff]
        %v402 = vld [vmem:[#allocation6 + $0x90] sm:$0xff]
        %v403 = vld [vmem:[#allocation6 + $0x98] sm:$0xff]
        %v404 = vld [vmem:[#allocation6 + $0xa0] sm:$0xff]
        %v405 = vld [vmem:[#allocation6 + $0xa8] sm:$0xff]
        %v406 = vld [vmem:[#allocation6 + $0xb0] sm:$0xff]
        %v407 = vld [vmem:[#allocation6 + $0xb8] sm:$0xff]
        %v408 = vld [vmem:[#allocation6 + $0xc0] sm:$0xff]
        %v409 = vld [vmem:[#allocation6 + $0xc8] sm:$0xff]
        %v410 = vld [vmem:[#allocation6 + $0xd0] sm:$0xff]
        %v411 = vld [vmem:[#allocation6 + $0xd8] sm:$0xff]
        %v412 = vld [vmem:[#allocation6 + $0xe0] sm:$0xff]
        %v413 = vld [vmem:[#allocation6 + $0xe8] sm:$0xff]
        %v414 = vld [vmem:[#allocation6 + $0xf0] sm:$0xff]
        %v415 = vld [vmem:[#allocation6 + $0xf8] sm:$0xff]
        %v417 = vlaneseq
        %v418 = vshrl.u32 %v417, 7
        %v419 = vsub.s32 0, %v418
        %v420 = vrot.slane %v286, %v419
        %422 = vmatprep.subr.mxu0 0.0
        %423 = vmatpush1.msra.mxu0 %v384
        %424 = vmatprep.subr.mxu0 0.0
        %425 = vmatpush1.msra.mxu0 %v385
        %426 = vmatprep.subr.mxu0 0.0
        %427 = vmatpush1.msra.mxu0 %v386
        %428 = vmatprep.subr.mxu0 0.0
        %429 = vmatpush1.msra.mxu0 %v387
        %430 = vmatprep.subr.mxu0 0.0
        %431 = vmatpush1.msra.mxu0 %v388
        %432 = vmatprep.subr.mxu0 0.0
        %433 = vmatpush1.msra.mxu0 %v389
        %434 = vmatprep.subr.mxu0 0.0
        %435 = vmatpush1.msra.mxu0 %v390
        %436 = vmatprep.subr.mxu0 0.0
        %437 = vmatpush1.msra.mxu0 %v391
        %438 = vmatprep.subr.mxu0 0.0
        %439 = vmatpush1.msra.mxu0 %v392
        %440 = vmatprep.subr.mxu0 0.0
        %441 = vmatpush1.msra.mxu0 %v393
        %442 = vmatprep.subr.mxu0 0.0
        %443 = vmatpush1.msra.mxu0 %v394
        %444 = vmatprep.subr.mxu0 0.0
        %445 = vmatpush1.msra.mxu0 %v395
        %446 = vmatprep.subr.mxu0 0.0
        %447 = vmatpush1.msra.mxu0 %v396
        %448 = vmatprep.subr.mxu0 0.0
        %449 = vmatpush1.msra.mxu0 %v397
        %450 = vmatprep.subr.mxu0 0.0
        %451 = vmatpush1.msra.mxu0 %v398
        %452 = vmatprep.subr.mxu0 0.0
        %453 = vmatpush1.msra.mxu0 %v399
        %454 = vmatprep.subr.mxu0 0.0
        %455 = vmatpush1.msra.mxu0 %v400
        %456 = vmatprep.subr.mxu0 0.0
        %457 = vmatpush1.msra.mxu0 %v401
        %458 = vmatprep.subr.mxu0 0.0
        %459 = vmatpush1.msra.mxu0 %v402
        %460 = vmatprep.subr.mxu0 0.0
        %461 = vmatpush1.msra.mxu0 %v403
        %462 = vmatprep.subr.mxu0 0.0
        %463 = vmatpush1.msra.mxu0 %v404
        %464 = vmatprep.subr.mxu0 0.0
        %465 = vmatpush1.msra.mxu0 %v405
        %466 = vmatprep.subr.mxu0 0.0
        %467 = vmatpush1.msra.mxu0 %v406
        %468 = vmatprep.subr.mxu0 0.0
        %469 = vmatpush1.msra.mxu0 %v407
        %470 = vmatprep.subr.mxu0 0.0
        %471 = vmatpush1.msra.mxu0 %v408
        %472 = vmatprep.subr.mxu0 0.0
        %473 = vmatpush1.msra.mxu0 %v409
        %474 = vmatprep.subr.mxu0 0.0
        %475 = vmatpush1.msra.mxu0 %v410
        %476 = vmatprep.subr.mxu0 0.0
        %477 = vmatpush1.msra.mxu0 %v411
        %478 = vmatprep.subr.mxu0 0.0
        %479 = vmatpush1.msra.mxu0 %v412
        %480 = vmatprep.subr.mxu0 0.0
        %481 = vmatpush1.msra.mxu0 %v413
        %482 = vmatprep.subr.mxu0 0.0
        %483 = vmatpush1.msra.mxu0 %v414
        %484 = vmatprep.subr.mxu0 0.0
        %485 = vmatpush1.msra.mxu0 %v415
        %486 = vmatprep.mubr.f32.mxu0 %v383
        %487 = vmatmul.mubr.f32.gmra.mrb[0].mxu0 %v382
        %v488 = vpop.f32.mrb[0].mxu0
        %v489 = vadd.f32 %v420, %v488
        %v490 = vpop.f32.mrb[0].mxu0
        %491 = vdwg.mxu0
        %v492 = vmax.f32 %v489, 0.0
        %v493 = vld [vmem:[#allocation7] sm:$0xff]
        %v494 = vld [vmem:[#allocation7 + $0x8] sm:$0xff]
        %v495 = vld [vmem:[#allocation7 + $0x10] sm:$0xff]
        %v496 = vld [vmem:[#allocation7 + $0x18] sm:$0xff]
        %v497 = vld [vmem:[#allocation7 + $0x20] sm:$0xff]
        %v498 = vld [vmem:[#allocation7 + $0x28] sm:$0xff]
        %v499 = vld [vmem:[#allocation7 + $0x30] sm:$0xff]
        %v500 = vld [vmem:[#allocation7 + $0x38] sm:$0xff]
        %v501 = vld [vmem:[#allocation7 + $0x40] sm:$0xff]
        %v502 = vld [vmem:[#allocation7 + $0x48] sm:$0xff]
        %v503 = vld [vmem:[#allocation7 + $0x50] sm:$0xff]
        %v504 = vld [vmem:[#allocation7 + $0x58] sm:$0xff]
        %v505 = vld [vmem:[#allocation7 + $0x60] sm:$0xff]
        %v506 = vld [vmem:[#allocation7 + $0x68] sm:$0xff]
        %v507 = vld [vmem:[#allocation7 + $0x70] sm:$0xff]
        %v508 = vld [vmem:[#allocation7 + $0x78] sm:$0xff]
        %v510 = vlaneseq
        %v511 = vshrl.u32 %v510, 7
        %v512 = vsub.s32 0, %v511
        %v513 = vrot.slane %v287, %v512
        %515 = vmatprep.subr.mxu0 0.0
        %516 = vmatpush1.msra.mxu0 %v493
        %517 = vmatprep.subr.mxu0 0.0
        %518 = vmatpush1.msra.mxu0 %v494
        %519 = vmatprep.subr.mxu0 0.0
        %520 = vmatpush1.msra.mxu0 %v495
        %521 = vmatprep.subr.mxu0 0.0
        %522 = vmatpush1.msra.mxu0 %v496
        %523 = vmatprep.subr.mxu0 0.0
        %524 = vmatpush1.msra.mxu0 %v497
        %525 = vmatprep.subr.mxu0 0.0
        %526 = vmatpush1.msra.mxu0 %v498
        %527 = vmatprep.subr.mxu0 0.0
        %528 = vmatpush1.msra.mxu0 %v499
        %529 = vmatprep.subr.mxu0 0.0
        %530 = vmatpush1.msra.mxu0 %v500
        %531 = vmatprep.subr.mxu0 0.0
        %532 = vmatpush1.msra.mxu0 %v501
        %533 = vmatprep.subr.mxu0 0.0
        %534 = vmatpush1.msra.mxu0 %v502
        %535 = vmatprep.subr.mxu0 0.0
        %536 = vmatpush1.msra.mxu0 %v503
        %537 = vmatprep.subr.mxu0 0.0
        %538 = vmatpush1.msra.mxu0 %v504
        %539 = vmatprep.subr.mxu0 0.0
        %540 = vmatpush1.msra.mxu0 %v505
        %541 = vmatprep.subr.mxu0 0.0
        %542 = vmatpush1.msra.mxu0 %v506
        %543 = vmatprep.subr.mxu0 0.0
        %544 = vmatpush1.msra.mxu0 %v507
        %545 = vmatprep.subr.mxu0 0.0
        %546 = vmatpush1.msra.mxu0 %v508
        %547 = vmatprep.subr.mxu0 0.0
        %548 = vmatpush1.msra.mxu0 0.0
        %549 = vmatprep.subr.mxu0 0.0
        %550 = vmatpush1.msra.mxu0 0.0
        %551 = vmatprep.subr.mxu0 0.0
        %552 = vmatpush1.msra.mxu0 0.0
        %553 = vmatprep.subr.mxu0 0.0
        %554 = vmatpush1.msra.mxu0 0.0
        %555 = vmatprep.subr.mxu0 0.0
        %556 = vmatpush1.msra.mxu0 0.0
        %557 = vmatprep.subr.mxu0 0.0
        %558 = vmatpush1.msra.mxu0 0.0
        %559 = vmatprep.subr.mxu0 0.0
        %560 = vmatpush1.msra.mxu0 0.0
        %561 = vmatprep.subr.mxu0 0.0
        %562 = vmatpush1.msra.mxu0 0.0
        %563 = vmatprep.subr.mxu0 0.0
        %564 = vmatpush1.msra.mxu0 0.0
        %565 = vmatprep.subr.mxu0 0.0
        %566 = vmatpush1.msra.mxu0 0.0
        %567 = vmatprep.subr.mxu0 0.0
        %568 = vmatpush1.msra.mxu0 0.0
        %569 = vmatprep.subr.mxu0 0.0
        %570 = vmatpush1.msra.mxu0 0.0
        %571 = vmatprep.subr.mxu0 0.0
        %572 = vmatpush1.msra.mxu0 0.0
        %573 = vmatprep.subr.mxu0 0.0
        %574 = vmatpush1.msra.mxu0 0.0
        %575 = vmatprep.subr.mxu0 0.0
        %576 = vmatpush1.msra.mxu0 0.0
        %577 = vmatprep.subr.mxu0 0.0
        %578 = vmatpush1.msra.mxu0 0.0
        %579 = vmatprep.mubr.f32.mxu0 0.0
        %580 = vmatmul.mubr.f32.gmra.mrb[0].mxu0 %v492
        %v581 = vpop.f32.mrb[0].mxu0
        %v582 = vadd.f32 %v513, %v581
        %v583 = vpop.f32.mrb[0].mxu0
        %584 = vdwg.mxu0
        %v585 = vrot.slane %v582, 4
        %v586 = vmax.f32 %v582, %v585
        %v587 = vrot.slane %v586, 2
        %v588 = vmax.f32 %v586, %v587
        %v589 = vrot.slane %v588, 1
        %v590 = vmax.f32 %v588, %v589
        %v591 = vsub.f32 %v582, %v590
        %v592 = vmul.f32 %v591, 1.442695
        %v593 = vpow.pop %v592
        %v594 = vrot.slane %v593, 4
        %v595 = vadd.f32 %v593, %v594
        %v596 = vrot.slane %v595, 2
        %v597 = vadd.f32 %v595, %v596
        %v598 = vrot.slane %v597, 1
        %v599 = vadd.f32 %v597, %v598
        %v600 = vrcp.pop %v599
        %v601 = vmul.f32 %v593, %v600
        %v602 = vlog2.pop %v582
        %v603 = vmul.f32 %v602, 0.6931472
        %v604 = vlaneseq
        %v605 = vand.u32 %v604, 127
        %vm606 = vcmp.lt.s32.totalorder %v605, 4
        %vm607 = vcmp.lt.s32.totalorder %v605, 8
        %v608 = vsel %vm607, %v603, %v582
        %v609 = vsel %vm606, %v601, %v608
        %610 = vst [vmem:[%s283] sm:$0xff] %v609
        %p611 = scmp.lt.s32.totalorder %s21, 15
        %s612 = scalar_select %p611, %s21, 15
        %s613 = smul.addr %s612, 8
        %s614 = scalar_lea.vmem %s5, %s613
        // Predicated region
        $region57: #{_ppo_forward_stacked.1} parent=39 // pred_check
          %p615 = pneg %p149
        $region58: #{_ppo_forward_stacked.1} parent=39 // pred_check_branch
          %617 = sbr.rel (%p615) target = $region60
        $region59: #{_ppo_forward_stacked.1} parent=39 // pred_region
          _
        $region60: #{_ppo_forward_stacked.1} parent=39 // pred_fallthru
          _
      $region40: #{_ppo_forward_stacked.1} parent=5 // pred_fallthru
        _
      %p618 = scmp.le.s32.totalorder 2, %s16
      // Predicated region
      $region61: #{_ppo_forward_stacked.1} parent=5 // pred_check
        %p619 = pneg %p618
      $region62: #{_ppo_forward_stacked.1} parent=5 // pred_check_branch
        %621 = sbr.rel (%p619) target = $region64
      $region63: #{_ppo_forward_stacked.1} parent=5 // pred_region
        %s622 = ssub.s32 %s16, 2
        // Predicated region
        $region65: #{_ppo_forward_stacked.1} parent=63 // pred_check
          %p623 = pneg %p155
        $region66: #{_ppo_forward_stacked.1} parent=63 // pred_check_branch
          %625 = sbr.rel (%p623) target = $region68
        $region67: #{_ppo_forward_stacked.1} parent=63 // pred_region
          %p626 = scmp.lt.s32.totalorder %s22, 15
          %s627 = scalar_select %p626, %s22, 15
          %s628 = smul.addr %s627, 8
          %s629 = scalar_lea.vmem %s5, %s628
        $region68: #{_ppo_forward_stacked.1} parent=63 // pred_fallthru
          _
      $region64: #{_ppo_forward_stacked.1} parent=5 // pred_fallthru
        _
    $region6: #{_ppo_forward_stacked.1} parent=1 // loop_footer
      %s20 = sadd.s32 1, %s16
    $region7: #{_ppo_forward_stacked.1} parent=1 // loop_footer_branch
      %15 = sbr.rel target = $region3
    $region8: #{_ppo_forward_stacked.1} parent=1 // loop_exit
      _
    %630 = vsyncpa [#allocation3], 1
    %s631 = scalar_lea.sflag [#allocation3], 1
    %632 = vsyncpa %s631, 1
    %633 = vsyncpa [#allocation5], 1
    %634 = vsyncpa [#allocation8], 1

</llo_original>
